<compile_context>
chip_gen: v6e
topology: v6e:2x2x1
jax: 0.10.0
libtpu: 0.0.40
codegen_flags: <defaults>
</compile_context>

<pallas_src>
import numpy as np

import jax
import jax.numpy as jnp
from jax.experimental import pallas as pl
from jax.experimental.pallas import tpu as pltpu


# --------------------------- budgets / helpers -------------------------------

def _vmem_budgets():
    """Generation-aware (scoped-vmem-limit, per-buffer-budget) in bytes."""
    vmem_cap = None
    try:
        info = pltpu.get_tpu_info()
        vmem_cap = getattr(info, "vmem_capacity_bytes", None)
    except Exception:
        vmem_cap = None
    if vmem_cap is not None and vmem_cap >= 128 * 1024 * 1024:
        # v5e / v6e: 128 MiB physical VMEM -> bigger tiles, deeper pipeline.
        return 64 * 1024 * 1024, 8 * 1024 * 1024
    # v7x (64 MiB physical) or unknown: conservative.
    return 32 * 1024 * 1024, 4 * 1024 * 1024


_VMEM_LIMIT_BYTES, _PER_BUFFER_BYTES = _vmem_budgets()
_MIN_SPLIT_BYTES = 1 * 1024 * 1024   # want >=2 parallel programs above this
_LANE_CAP = 16384                    # max lane extent of a single block


def _round_down(v, m):
    return max((v // m) * m, m)


def _round_up(v, m):
    return ((v + m - 1) // m) * m


def _sublane_pitch(dtype):
    """Sublane padding granularity in VMEM (8 for f32, 16 for bf16, ...)."""
    itemsize = jnp.dtype(dtype).itemsize
    return 8 * max(4 // max(itemsize, 1), 1)


# -------------------------------- kernels ------------------------------------

def _sigmoid_kernel(x_ref, o_ref):
    x = x_ref[...].astype(jnp.float32)
    o_ref[...] = jax.nn.sigmoid(x).astype(o_ref.dtype)


def _softmax_mid_kernel(x_ref, o_ref):
    # block (TB, R, TL): softmax over axis 1 (sublane axis).
    x = x_ref[...].astype(jnp.float32)
    m = jnp.max(x, axis=1, keepdims=True)
    e = jnp.exp(x - m)
    s = jnp.sum(e, axis=1, keepdims=True)
    o_ref[...] = (e / s).astype(o_ref.dtype)


def _logsoftmax_mid_kernel(x_ref, o_ref):
    x = x_ref[...].astype(jnp.float32)
    m = jnp.max(x, axis=1, keepdims=True)
    sh = x - m
    lse = jnp.log(jnp.sum(jnp.exp(sh), axis=1, keepdims=True))
    o_ref[...] = (sh - lse).astype(o_ref.dtype)


def _softmax_last_kernel(x_ref, o_ref):
    # block (TM, N): softmax over the last (lane) axis.
    x = x_ref[...].astype(jnp.float32)
    m = jnp.max(x, axis=-1, keepdims=True)
    e = jnp.exp(x - m)
    s = jnp.sum(e, axis=-1, keepdims=True)
    o_ref[...] = (e / s).astype(o_ref.dtype)


def _logsoftmax_last_kernel(x_ref, o_ref):
    x = x_ref[...].astype(jnp.float32)
    m = jnp.max(x, axis=-1, keepdims=True)
    sh = x - m
    lse = jnp.log(jnp.sum(jnp.exp(sh), axis=-1, keepdims=True))
    o_ref[...] = (sh - lse).astype(o_ref.dtype)


# --------------------------- pallas_call wrappers -----------------------------

def _choose_lane_dim(total):
    """Largest multiple-of-128 divisor of `total` (<= _LANE_CAP), preferring a
    factorization that leaves at least 8 sublane rows."""
    best_full, best_any = None, None
    n = 128
    limit = min(total, _LANE_CAP)
    while n <= limit:
        if total % n == 0:
            best_any = n
            if total // n >= 8:
                best_full = n
        n += 128
    return best_full if best_full is not None else best_any


def _elementwise_call(kernel, x):
    """Elementwise op: fold to a sublane-full, lane-dense 2-D slab; 2-D
    parallel grid."""
    orig_shape = x.shape
    total = int(np.prod(orig_shape)) if x.ndim > 0 else 1
    itemsize = jnp.dtype(x.dtype).itemsize

    lane = _choose_lane_dim(total) if total >= 128 else None
    if lane is not None:
        x2 = x.reshape(total // lane, lane)
    elif x.ndim >= 2:
        # Fallback (total not 128-divisible): last dim on lanes, rest on sublanes.
        x2 = x.reshape(int(np.prod(orig_shape[:-1])), orig_shape[-1])
    else:
        x2 = x.reshape(1, max(total, 1))

    M, N = x2.shape
    sub = _sublane_pitch(x2.dtype)

    # Lane tiling: full dim when it fits, else 128-multiples.
    tn = N if N <= _LANE_CAP else _round_down(min(N, _LANE_CAP), 128)
    tn_pad = _round_up(tn, 128)

    # Sublane tiling within the per-buffer budget.
    tm_cap = max(_PER_BUFFER_BYTES // max(tn_pad * itemsize, 1), sub)
    tm = M if M <= tm_cap else _round_down(tm_cap, sub)

    # v7x has 2 TensorCores: biggish tensors should give >=2 parallel blocks.
    if (total * itemsize > _MIN_SPLIT_BYTES
            and pl.cdiv(M, tm) * pl.cdiv(N, tn) < 2 and M >= 2 * sub):
        tm = max(_round_down(pl.cdiv(M, 2), sub), sub)

    y2 = pl.pallas_call(
        kernel,
        out_shape=jax.ShapeDtypeStruct((M, N), x2.dtype),
        grid=(pl.cdiv(M, tm), pl.cdiv(N, tn)),
        in_specs=[pl.BlockSpec((tm, tn), lambda i, j: (i, j))],
        out_specs=pl.BlockSpec((tm, tn), lambda i, j: (i, j)),
        compiler_params=pltpu.CompilerParams(
            dimension_semantics=("parallel", "parallel"),
            vmem_limit_bytes=_VMEM_LIMIT_BYTES),
    )(x2)
    return y2.reshape(orig_shape)


def _softmax_mid_call(kernel, x3):
    """x3: (B, R, L), reduction over R (kept whole, on sublanes); L on lanes.
    Blocks are (TB, R, TL) sized near the per-buffer budget (sublane-padding
    aware), with both B and L tiled as parallel grid axes."""
    B, R, L = x3.shape
    itemsize = jnp.dtype(x3.dtype).itemsize
    sub = _sublane_pitch(x3.dtype)
    r_pad = _round_up(R, sub)                           # VMEM sublane padding

    # Lane tiling: as wide as the budget allows.
    tl_cap = max(_PER_BUFFER_BYTES // max(r_pad * itemsize, 1), 128)
    tl = L if L <= tl_cap else _round_down(min(tl_cap, _LANE_CAP), 128)
    tl_pad = _round_up(tl, 128)

    # Batch tiling: fill the remaining budget with several batch rows per step.
    tb_cap = max(_PER_BUFFER_BYTES // max(r_pad * tl_pad * itemsize, 1), 1)
    tb = min(B, tb_cap)

    # >=2 parallel programs for biggish tensors (both v7x TensorCores busy).
    total_bytes = B * R * L * itemsize
    if total_bytes > _MIN_SPLIT_BYTES and pl.cdiv(B, tb) * pl.cdiv(L, tl) < 2:
        if B >= 2:
            tb = pl.cdiv(B, 2)
        elif tl >= 256:
            tl = _round_down(pl.cdiv(tl, 2), 128)

    return pl.pallas_call(
        kernel,
        out_shape=jax.ShapeDtypeStruct((B, R, L), x3.dtype),
        grid=(pl.cdiv(B, tb), pl.cdiv(L, tl)),
        in_specs=[pl.BlockSpec((tb, R, tl), lambda b, l: (b, 0, l))],
        out_specs=pl.BlockSpec((tb, R, tl), lambda b, l: (b, 0, l)),
        compiler_params=pltpu.CompilerParams(
            dimension_semantics=("parallel", "parallel"),
            vmem_limit_bytes=_VMEM_LIMIT_BYTES),
    )(x3)


def _softmax_last_call(kernel, x2):
    """x2: (M, N), reduction over the last (lane) axis with full-width rows."""
    M, N = x2.shape
    itemsize = jnp.dtype(x2.dtype).itemsize
    sub = _sublane_pitch(x2.dtype)
    row_bytes = _round_up(N, 128) * itemsize

    # VMEM guard (v7x: 32 MiB scoped): 2 in + 2 out double-buffers must fit
    # even at the minimal sublane-pitch block.
    if 4 * sub * row_bytes > _VMEM_LIMIT_BYTES:
        # TODO(synk): implement a tiled two-pass / online softmax over N for
        # reduction rows too large for VMEM; fall back to XLA for now.
        is_log = kernel is _logsoftmax_last_kernel
        fn = jax.nn.log_softmax if is_log else jax.nn.softmax
        return fn(x2.astype(jnp.float32), axis=-1).astype(x2.dtype)

    tm_cap = max(_PER_BUFFER_BYTES // row_bytes, sub)
    tm_cap = min(tm_cap, 4096)
    tm = M if M <= tm_cap else _round_down(tm_cap, sub)

    # >=2 parallel programs for biggish tensors (v7x has 2 TCs).
    if M * N * itemsize > _MIN_SPLIT_BYTES and pl.cdiv(M, tm) < 2 and M >= 2 * sub:
        tm = max(_round_down(pl.cdiv(M, 2), sub), sub)

    return pl.pallas_call(
        kernel,
        out_shape=jax.ShapeDtypeStruct((M, N), x2.dtype),
        grid=(pl.cdiv(M, tm),),
        in_specs=[pl.BlockSpec((tm, N), lambda i: (i, 0))],
        out_specs=pl.BlockSpec((tm, N), lambda i: (i, 0)),
        compiler_params=pltpu.CompilerParams(
            dimension_semantics=("parallel",),
            vmem_limit_bytes=_VMEM_LIMIT_BYTES),
    )(x2)


# ------------------------------- module port ---------------------------------

class Activation:
    """JAX/Pallas port of the PyTorch `Activation` module.

    name: None / 'identity' / 'sigmoid' / 'softmax2d' / 'softmax' / 'logsoftmax'
    params: for softmax / logsoftmax, accepts dim= (default 1).
    Note: the spec's 'softmax2d' is nn.Softmax(dim=1) (NOT nn.Softmax2d).
    """

    _NAMES = ("identity", "sigmoid", "softmax", "softmax2d", "logsoftmax")

    def __init__(self, name, **params):
        if name is None:
            name = "identity"
        if callable(name):
            # TODO(synk): arbitrary user-provided callables can't be lowered
            # generically to a Pallas kernel; not supported here.
            raise ValueError("callable activations not supported in Pallas port")
        if name not in self._NAMES:
            raise ValueError(
                "Activation should be sigmoid/softmax/softmax2d/logsoftmax/"
                "identity/None; got {}".format(name))
        self._name = name
        if name == "softmax2d":
            self._dim = 1
        else:
            self._dim = params.get("dim", 1)

    def __call__(self, x):
        if self._name == "identity":
            # No kernel launch: avoids a pure read+write of the whole tensor.
            return x

        if self._name == "sigmoid":
            return _elementwise_call(_sigmoid_kernel, x)

        # softmax / softmax2d / logsoftmax
        is_log = self._name == "logsoftmax"
        dim = self._dim % x.ndim
        shape = x.shape
        lead = int(np.prod(shape[:dim])) if dim > 0 else 1
        red = shape[dim]
        trail = int(np.prod(shape[dim + 1:])) if dim + 1 < x.ndim else 1

        if trail == 1:
            # Reduction over the (effectively) last axis: reduce over lanes
            # with full-width rows (avoids lane-width-1 masked stores).
            x2 = x.reshape(lead, red)
            kernel = _logsoftmax_last_kernel if is_log else _softmax_last_kernel
            y2 = _softmax_last_call(kernel, x2)
            return y2.reshape(shape)

        # Reduction over a middle axis: pure reshape (no transpose/moveaxis)
        # to (B, R, L) with R on sublanes and L tiled on lanes.
        x3 = x.reshape(lead, red, trail)
        kernel = _logsoftmax_mid_kernel if is_log else _softmax_mid_kernel
        y3 = _softmax_mid_call(kernel, x3)
        return y3.reshape(shape)


# ----------------------------- demo / check -----------------------------------

if __name__ == "__main__":
    key = jax.random.PRNGKey(0)
    # NCHW input, small shapes: batch=2, channels=4, spatial=16x16
    x = jax.random.normal(key, (2, 4, 16, 16), dtype=jnp.float32)
    x2d = jax.random.normal(jax.random.PRNGKey(1), (8, 32), dtype=jnp.float32)

    # identity (short-circuit, no kernel)
    y_id = jax.block_until_ready(Activation("identity")(x))
    np.testing.assert_allclose(np.asarray(y_id), np.asarray(x), rtol=1e-6)

    # sigmoid (elementwise path, fully-flattened lane-dense slab)
    y_sig = jax.block_until_ready(Activation("sigmoid")(x))
    np.testing.assert_allclose(
        np.asarray(y_sig), np.asarray(jax.nn.sigmoid(x)), rtol=1e-5, atol=1e-6)

    # softmax2d (softmax over channel dim=1 of NCHW) - mid-axis path
    y_sm2d = jax.block_until_ready(Activation("softmax2d")(x))
    np.testing.assert_allclose(
        np.asarray(y_sm2d), np.asarray(jax.nn.softmax(x, axis=1)),
        rtol=1e-5, atol=1e-6)

    # softmax with explicit dim=1 - mid-axis path
    y_sm = jax.block_until_ready(Activation("softmax", dim=1)(x))
    np.testing.assert_allclose(
        np.asarray(y_sm), np.asarray(jax.nn.softmax(x, axis=1)),
        rtol=1e-5, atol=1e-6)

    # softmax over the last dim - lane-reduction path
    y_sm_last = jax.block_until_ready(Activation("softmax", dim=-1)(x))
    np.testing.assert_allclose(
        np.asarray(y_sm_last), np.asarray(jax.nn.softmax(x, axis=-1)),
        rtol=1e-5, atol=1e-6)

    # softmax on a 2-D input, dim=1 (lane-reduction path, lane-dense)
    y_sm_2d = jax.block_until_ready(Activation("softmax", dim=1)(x2d))
    np.testing.assert_allclose(
        np.asarray(y_sm_2d), np.asarray(jax.nn.softmax(x2d, axis=1)),
        rtol=1e-5, atol=1e-6)

    # logsoftmax with explicit dim=1 - mid-axis path
    y_lsm = jax.block_until_ready(Activation("logsoftmax", dim=1)(x))
    np.testing.assert_allclose(
        np.asarray(y_lsm), np.asarray(jax.nn.log_softmax(x, axis=1)),
        rtol=1e-5, atol=1e-5)

    # logsoftmax over the last dim - lane-reduction path
    y_lsm_last = jax.block_until_ready(Activation("logsoftmax", dim=-1)(x))
    np.testing.assert_allclose(
        np.asarray(y_lsm_last), np.asarray(jax.nn.log_softmax(x, axis=-1)),
        rtol=1e-5, atol=1e-5)

    print("KERNEL_OK")
</pallas_src>

<mosaic_0001>
module attributes {stable_mosaic.version = 11 : i64} {
  func.func @_sigmoid_kernel(%arg0: i32, %arg1: i32, %arg2: memref<8x256xf32, #tpu.memory_space<vmem>>, %arg3: memref<8x256xf32, #tpu.memory_space<vmem>>) attributes {dimension_semantics = [#tpu.dimension_semantics<parallel>, #tpu.dimension_semantics<parallel>], iteration_bounds = array<i64: 1, 1>, scalar_prefetch = 0 : i64, scratch_operands = 0 : i64, tpu.core_type = #tpu.core_type<tc>, window_params = [{transform_indices = @transform_0, window_bounds = array<i64: 8, 256>}, {transform_indices = @transform_1, window_bounds = array<i64: 8, 256>}]} {
    %c0 = arith.constant 0 : index
    %c0_0 = arith.constant 0 : index
    %0 = vector.load %arg2[%c0, %c0_0] : memref<8x256xf32, #tpu.memory_space<vmem>>, vector<8x256xf32>
    %1 = arith.negf %0 : vector<8x256xf32>
    %2 = math.exp %1 : vector<8x256xf32>
    %cst = arith.constant 1.000000e+00 : f32
    %3 = vector.broadcast %cst : f32 to vector<8x256xf32>
    %4 = arith.addf %3, %2 : vector<8x256xf32>
    %5 = arith.divf %3, %4 : vector<8x256xf32>
    %c0_1 = arith.constant 0 : index
    %c0_2 = arith.constant 0 : index
    %6 = vector.load %arg3[%c0_1, %c0_2] : memref<8x256xf32, #tpu.memory_space<vmem>>, vector<8x256xf32>
    tpu.vector_store %arg3[%c0_1, %c0_2], %5 {strides = array<i32>} : memref<8x256xf32, #tpu.memory_space<vmem>>, vector<8x256xf32>,
    return
  }
  func.func @transform_0(%arg0: i32, %arg1: i32) -> (i32, i32) {
    %c0_i32 = arith.constant 0 : i32
    return %arg0, %arg1 : i32, i32
  }
  func.func @transform_1(%arg0: i32, %arg1: i32) -> (i32, i32) {
    %c0_i32 = arith.constant 0 : i32
    return %arg0, %arg1 : i32, i32
  }
}

</mosaic_0001>

<llo_original>
// kernel: tpu_custom_call.1
$region0: #{tpu_custom_call.1}
  #allocation0 [shape = 'u32[]', space=smem, size = 0x4, offset = 0x4, fixed_abs, tag = 'smem constant byte address 0x4 - core index']
  #allocation1 [shape = 'u32[144,128]{1,0:T(1,128)}', space=vmem, size = 0x12000, scoped, tag = 'internal scratch']
  %s0 = inlined_call_operand.hbm [shape: f32[8,256], index: 0, kind: input, shape index: {}]
  %s1 = inlined_call_operand.hbm [shape: f32[8,256], index: 1, kind: output, shape index: {}]
  %s2 = sld [smem:[#allocation0]]
  $region18: #{tpu_custom_call.1} parent=0
    _
  %s4 = ssub.s32 1, %s2
  %s5 = scalar_select 0, %s4, %s2
  $region1: #{tpu_custom_call.1} parent=0
    #allocation2 [shape = 'u8[8192]{0}', space=vmem, size = 0x2000, scoped, tag = 'input window, operand 0, single buffered']
    #allocation3 [shape = 's32[1]{0}', space=sflag, size = 0x4, scoped, tag = 'scoped memory for tpu_custom_call.1']
    #allocation4 [shape = 's32[1]{0}', space=sflag, size = 0x4, scoped, tag = 'scoped memory for tpu_custom_call.1']
    #allocation5 [shape = 'u8[8192]{0}', space=vmem, size = 0x2000, scoped, tag = 'output window, operand 0, single buffered']
    %6 = vsyncpa [#allocation3], 0
    %7 = vsyncpa [#allocation4], 0
    // Predicated region
    $region2: #{tpu_custom_call.1} parent=1 // pred_check
      _
    $region3: #{tpu_custom_call.1} parent=1 // pred_check_branch
      %9 = sbr.rel (0) target = $region5
    $region4: #{tpu_custom_call.1} parent=1 // pred_region
      %s11 = ssub.s32 256, 256
      %12 = vsyncadd [#allocation3], %s11
      %s14 = sshll.u32 [#allocation2], 4
      %s15 = int_to_ptr.vmem [resolvable:$true] %s14
      %17 = dma.hbm_to_vmem [thread:$0]  %s0, 256, %s15, [#allocation3]
    $region5: #{tpu_custom_call.1} parent=1 // pred_fallthru
      _
    // Predicated region
    $region6: #{tpu_custom_call.1} parent=1 // pred_check
      _
    $region7: #{tpu_custom_call.1} parent=1 // pred_check_branch
      %19 = sbr.rel (0) target = $region9
    $region8: #{tpu_custom_call.1} parent=1 // pred_region
      %20 = dma.done [#allocation3], 256
    $region9: #{tpu_custom_call.1} parent=1 // pred_fallthru
      _
    %v21 = vld [vmem:[#allocation2] sm:$0xff]
    %v22 = vld [vmem:[#allocation2 + $0x8] sm:$0xff]
    %v23 = vxor.u32 %v21, 2147483648
    %v24 = vxor.u32 %v22, 2147483648
    %v25 = vmul.f32 %v23, 1.442695
    %v26 = vpow.pop %v25
    %v27 = vmul.f32 %v24, 1.442695
    %v28 = vpow.pop %v27
    %v29 = vadd.f32 %v26, 1.0
    %v30 = vadd.f32 %v28, 1.0
    %v31 = vrcp.pop %v29
    %v32 = vmul.f32 1.0, %v31
    %v33 = vrcp.pop %v30
    %v34 = vmul.f32 1.0, %v33
    %35 = vst [vmem:[#allocation5] sm:$0xff] %v32
    %36 = vst [vmem:[#allocation5 + $0x8] sm:$0xff] %v34
    // Predicated region
    $region10: #{tpu_custom_call.1} parent=1 // pred_check
      _
    $region11: #{tpu_custom_call.1} parent=1 // pred_check_branch
      %38 = sbr.rel (0) target = $region13
    $region12: #{tpu_custom_call.1} parent=1 // pred_region
      %s40 = ssub.s32 256, 256
      %41 = vsyncadd [#allocation4], %s40
      %s43 = sshll.u32 [#allocation5], 4
      %s44 = int_to_ptr.vmem [resolvable:$true] %s43
      %46 = dma.vmem_to_hbm [thread:$0]  %s44, 256, %s1, [#allocation4]
    $region13: #{tpu_custom_call.1} parent=1 // pred_fallthru
      _
    // Predicated region
    $region14: #{tpu_custom_call.1} parent=1 // pred_check
      _
    $region15: #{tpu_custom_call.1} parent=1 // pred_check_branch
      %48 = sbr.rel (0) target = $region17
    $region16: #{tpu_custom_call.1} parent=1 // pred_region
      %49 = dma.done [#allocation4], 256
    $region17: #{tpu_custom_call.1} parent=1 // pred_fallthru
      _
    %50 = vsyncpa [#allocation3], 1
    %51 = vsyncpa [#allocation4], 1

</llo_original>
